<compile_context>
chip_gen: v6e
topology: v6e:2x2x1
jax: 0.10.0
libtpu: 0.0.40
codegen_flags: <defaults>
</compile_context>

<pallas_src>
import functools

import jax
import jax.numpy as jnp
from jax.experimental import pallas as pl
from jax.experimental.pallas import tpu as pltpu


# ----------------------------- fused Pallas kernel -----------------------------

def _decoder_step_kernel(*refs, n_layers, hid):
    """One full decoder step.  All refs are whole arrays resident in VMEM.

    Operand layout (natural, unpadded shapes):
      [0] inp                       (B, output_dim)   f32
      [1] hidden  (aliased out 1)   (L, B, hid)       f32
      [2] cell    (aliased out 2)   (L, B, hid)       f32
      [3 .. 3+L)        W_ih_l      (in_l, 4*hid)     bf16  (layer 0 has embedding folded)
      [3+L .. 3+2L)     W_hh_l      (hid, 4*hid)      bf16
      [3+2L .. 3+3L)    bias_l      (1, 4*hid)        f32   (b_ih + b_hh [+ emb_b @ W_ih])
      [3+3L]            fc_w        (hid, output_dim) bf16
      [3+3L+1]          fc_b        (1, output_dim)   f32
    Outputs: pred (B, output_dim) f32, h_out (L, B, hid) f32, c_out (L, B, hid) f32.
    """
    inp_ref, h_ref, c_ref = refs[0], refs[1], refs[2]
    w_ih = refs[3:3 + n_layers]
    w_hh = refs[3 + n_layers:3 + 2 * n_layers]
    bias = refs[3 + 2 * n_layers:3 + 3 * n_layers]
    fc_w_ref = refs[3 + 3 * n_layers]
    fc_b_ref = refs[3 + 3 * n_layers + 1]
    n_in = 3 + 3 * n_layers + 2
    pred_ref, h_out_ref, c_out_ref = refs[n_in], refs[n_in + 1], refs[n_in + 2]

    mm_dtype = fc_w_ref.dtype  # bf16: MXU-native operands, f32 accumulation below.

    # Embedding Linear is folded into layer-0 W_ih/bias; dropout is identity in eval mode.
    x = inp_ref[...]  # (B, output_dim) f32

    # Static unroll over layers (n_layers is small and known at trace time).
    for layer in range(n_layers):
        # Read this layer's old state *before* writing its new state (the only invariant
        # needed for the h/c in->out aliasing to be safe).
        h_prev = h_ref[layer]            # (B, hid) f32
        c_prev = c_ref[layer]            # (B, hid) f32

        gates = (jnp.dot(x.astype(mm_dtype), w_ih[layer][...],
                         preferred_element_type=jnp.float32)
                 + jnp.dot(h_prev.astype(mm_dtype), w_hh[layer][...],
                           preferred_element_type=jnp.float32)
                 + bias[layer][...])     # (B, 4*hid) f32

        # PyTorch gate order i, f, g, o; compact sub-lane slices (no gate padding).
        i_g = jax.nn.sigmoid(gates[:, 0 * hid:1 * hid])
        f_g = jax.nn.sigmoid(gates[:, 1 * hid:2 * hid])
        g_g = jnp.tanh(gates[:, 2 * hid:3 * hid])
        o_g = jax.nn.sigmoid(gates[:, 3 * hid:4 * hid])

        c_new = f_g * c_prev + i_g * g_g
        h_new = o_g * jnp.tanh(c_new)

        c_out_ref[layer] = c_new.astype(c_out_ref.dtype)
        h_out_ref[layer] = h_new.astype(h_out_ref.dtype)
        x = h_new  # layer l output feeds layer l+1 (seq_len == 1)

    pred_ref[...] = (jnp.dot(x.astype(mm_dtype), fc_w_ref[...],
                             preferred_element_type=jnp.float32)
                     + fc_b_ref[...]).astype(pred_ref.dtype)


# ----------------------------- forward wrapper -----------------------------

@functools.partial(jax.jit, donate_argnums=(2, 3))
def decoder_forward(weights, inp, hidden, cell):
    """Equivalent of Decoder.forward (eval mode).

    inp    : (B, output_dim)    f32
    hidden : (n_layers, B, hid) f32
    cell   : (n_layers, B, hid) f32
    returns (prediction (B, output_dim), hidden', cell') — hidden/cell updated in place.
    """
    n_layers, B, hid = hidden.shape
    output_dim = inp.shape[1]
    assert weights["w_hh"][0].shape == (hid, 4 * hid)

    operands = ([inp, hidden, cell]
                + list(weights["w_ih"]) + list(weights["w_hh"]) + list(weights["b"])
                + [weights["fc_w"], weights["fc_b"]])

    vmem = pl.BlockSpec(memory_space=pltpu.MemorySpace.VMEM)

    # Advisory cost hint for XLA's scheduler around the custom call.
    flops = 2 * B * hid * output_dim
    for wi, wh in zip(weights["w_ih"], weights["w_hh"]):
        flops += 2 * B * (wi.shape[0] * wi.shape[1] + wh.shape[0] * wh.shape[1])
    transcendentals = B * n_layers * 5 * hid
    bytes_accessed = (sum(x.size * x.dtype.itemsize
                          for x in jax.tree_util.tree_leaves((inp, hidden, cell, weights)))
                      + B * output_dim * 4 + 2 * hidden.size * 4)

    kernel = functools.partial(_decoder_step_kernel, n_layers=n_layers, hid=hid)
    return pl.pallas_call(
        kernel,
        out_shape=(
            jax.ShapeDtypeStruct((B, output_dim), jnp.float32),
            jax.ShapeDtypeStruct(hidden.shape, hidden.dtype),
            jax.ShapeDtypeStruct(cell.shape, cell.dtype),
        ),
        in_specs=[vmem] * len(operands),
        out_specs=(vmem, vmem, vmem),
        # hidden / cell recurrent state written back in place (P8).
        input_output_aliases={1: 1, 2: 2},
        cost_estimate=pl.CostEstimate(flops=flops,
                                      transcendentals=transcendentals,
                                      bytes_accessed=bytes_accessed),
    )(*operands)


# ----------------------------- parameter setup -----------------------------

def init_decoder_params(key, output_dim, emb_dim, hid_dim, n_layers):
    """Deterministic init mirroring the PyTorch module's parameter shapes.

    embedding : Linear(output_dim, emb_dim)      -> stored (output_dim, emb_dim)
    rnn       : LSTM(emb_dim, hid_dim, n_layers) -> per layer W_ih (in, 4H), W_hh (H, 4H),
                                                    combined bias b_ih + b_hh (1, 4H)
    fc_out    : Linear(hid_dim, output_dim)      -> stored (hid_dim, output_dim)
    """
    keys = iter(jax.random.split(key, 4 + 4 * n_layers))

    def unif(k, shape, bound):
        return jax.random.uniform(k, shape, jnp.float32, -bound, bound)

    params = {}
    be = 1.0 / (output_dim ** 0.5)
    params["emb_w"] = unif(next(keys), (output_dim, emb_dim), be)
    params["emb_b"] = unif(next(keys), (1, emb_dim), be)

    bf = 1.0 / (hid_dim ** 0.5)
    params["fc_w"] = unif(next(keys), (hid_dim, output_dim), bf)
    params["fc_b"] = unif(next(keys), (1, output_dim), bf)

    layers = []
    bl = 1.0 / (hid_dim ** 0.5)
    for layer in range(n_layers):
        in_dim = emb_dim if layer == 0 else hid_dim
        w_ih = unif(next(keys), (in_dim, 4 * hid_dim), bl)
        w_hh = unif(next(keys), (hid_dim, 4 * hid_dim), bl)
        b_ih = unif(next(keys), (1, 4 * hid_dim), bl)
        b_hh = unif(next(keys), (1, 4 * hid_dim), bl)
        layers.append((w_ih, w_hh, b_ih + b_hh))
    params["lstm"] = layers
    return params


def make_decoder_weights(params, mm_dtype=jnp.bfloat16):
    """Pack the PyTorch-layout params into the kernel's on-chip layout:
       * embedding Linear folded into layer-0 W_ih / bias (exact while dropout = identity)
       * matmul weights cast to bf16 (MXU-native); biases stay f32
       * no gate-block padding: gate columns stay compact [i | f | g | o] (4*hid wide)
    """
    w_ih, w_hh, b = [], [], []
    for layer, (wi, wh, bias) in enumerate(params["lstm"]):
        if layer == 0:
            bias = params["emb_b"] @ wi + bias   # fold embedding bias (f32, exact)
            wi = params["emb_w"] @ wi            # fold embedding weight (f32, then cast)
        w_ih.append(wi.astype(mm_dtype))
        w_hh.append(wh.astype(mm_dtype))
        b.append(bias)                           # f32
    return {
        "w_ih": tuple(w_ih),
        "w_hh": tuple(w_hh),
        "b": tuple(b),
        "fc_w": params["fc_w"].astype(mm_dtype),
        "fc_b": params["fc_b"],                  # f32
    }


# ----------------------------- pure-JAX reference -----------------------------

def reference_forward(params, inp, hidden, cell):
    """Exact eval-mode PyTorch semantics in f32 (embedding -> LSTM step -> fc_out)."""
    x = inp @ params["emb_w"] + params["emb_b"]
    H = hidden.shape[-1]
    new_h, new_c = [], []
    for layer, (w_ih, w_hh, b) in enumerate(params["lstm"]):
        gates = x @ w_ih + hidden[layer] @ w_hh + b
        i_g = jax.nn.sigmoid(gates[:, 0 * H:1 * H])
        f_g = jax.nn.sigmoid(gates[:, 1 * H:2 * H])
        g_g = jnp.tanh(gates[:, 2 * H:3 * H])
        o_g = jax.nn.sigmoid(gates[:, 3 * H:4 * H])
        c = f_g * cell[layer] + i_g * g_g
        h = o_g * jnp.tanh(c)
        new_h.append(h)
        new_c.append(c)
        x = h
    pred = x @ params["fc_w"] + params["fc_b"]
    return pred, jnp.stack(new_h), jnp.stack(new_c)


# ----------------------------- main -----------------------------

if __name__ == "__main__":
    OUTPUT_DIM = 16
    EMB_DIM = 32
    HID_DIM = 32
    N_LAYERS = 2
    BATCH = 2

    root = jax.random.PRNGKey(0)
    k_param, k_in, k_h, k_c = jax.random.split(root, 4)

    params = init_decoder_params(k_param, OUTPUT_DIM, EMB_DIM, HID_DIM, N_LAYERS)
    weights = make_decoder_weights(params)

    inp = jax.random.normal(k_in, (BATCH, OUTPUT_DIM), jnp.float32)
    hidden = jax.random.normal(k_h, (N_LAYERS, BATCH, HID_DIM), jnp.float32)
    cell = jax.random.normal(k_c, (N_LAYERS, BATCH, HID_DIM), jnp.float32)

    # Compute the f32 reference first: the kernel call donates the hidden/cell buffers.
    ref_pred, ref_h, ref_c = reference_forward(params, inp, hidden, cell)

    pred, new_hidden, new_cell = decoder_forward(weights, inp, hidden, cell)
    jax.block_until_ready((pred, new_hidden, new_cell))

    assert pred.shape == (BATCH, OUTPUT_DIM)
    assert new_hidden.shape == (N_LAYERS, BATCH, HID_DIM)
    assert new_cell.shape == (N_LAYERS, BATCH, HID_DIM)

    # bf16 matmul weights (f32 accumulation) => ~1e-2-scale deviations vs the f32
    # reference; tolerance loosened accordingly (still catches gate-order / fold bugs).
    assert jnp.allclose(pred, ref_pred, atol=5e-2, rtol=5e-2)
    assert jnp.allclose(new_hidden, ref_h, atol=5e-2, rtol=5e-2)
    assert jnp.allclose(new_cell, ref_c, atol=5e-2, rtol=5e-2)

    print("KERNEL_OK")
</pallas_src>

<mosaic_0001>
module attributes {stable_mosaic.version = 11 : i64} {
  func.func @_decoder_step_kernel(%arg0: memref<2x16xf32, #tpu.memory_space<vmem>>, %arg1: memref<2x2x32xf32, #tpu.memory_space<vmem>>, %arg2: memref<2x2x32xf32, #tpu.memory_space<vmem>>, %arg3: memref<16x128xbf16, #tpu.memory_space<vmem>>, %arg4: memref<32x128xbf16, #tpu.memory_space<vmem>>, %arg5: memref<32x128xbf16, #tpu.memory_space<vmem>>, %arg6: memref<32x128xbf16, #tpu.memory_space<vmem>>, %arg7: memref<1x128xf32, #tpu.memory_space<vmem>>, %arg8: memref<1x128xf32, #tpu.memory_space<vmem>>, %arg9: memref<32x16xbf16, #tpu.memory_space<vmem>>, %arg10: memref<1x16xf32, #tpu.memory_space<vmem>>, %arg11: memref<2x16xf32, #tpu.memory_space<vmem>>, %arg12: memref<2x2x32xf32, #tpu.memory_space<vmem>>, %arg13: memref<2x2x32xf32, #tpu.memory_space<vmem>>) attributes {dimension_semantics = [], scalar_prefetch = 0 : i64, scratch_operands = 0 : i64, tpu.core_type = #tpu.core_type<tc>} {
    %c0 = arith.constant 0 : index
    %c0_0 = arith.constant 0 : index
    %0 = vector.load %arg0[%c0, %c0_0] : memref<2x16xf32, #tpu.memory_space<vmem>>, vector<2x16xf32>
    %c0_1 = arith.constant 0 : index
    %c0_2 = arith.constant 0 : index
    %c0_3 = arith.constant 0 : index
    %1 = vector.load %arg1[%c0_1, %c0_2, %c0_3] : memref<2x2x32xf32, #tpu.memory_space<vmem>>, vector<1x2x32xf32>
    %2 = vector.shape_cast %1 : vector<1x2x32xf32> to vector<2x32xf32>
    %c0_4 = arith.constant 0 : index
    %c0_5 = arith.constant 0 : index
    %c0_6 = arith.constant 0 : index
    %3 = vector.load %arg2[%c0_4, %c0_5, %c0_6] : memref<2x2x32xf32, #tpu.memory_space<vmem>>, vector<1x2x32xf32>
    %4 = vector.shape_cast %3 : vector<1x2x32xf32> to vector<2x32xf32>
    %5 = arith.truncf %0 : vector<2x16xf32> to vector<2x16xbf16>
    %c0_7 = arith.constant 0 : index
    %c0_8 = arith.constant 0 : index
    %6 = vector.load %arg3[%c0_7, %c0_8] : memref<16x128xbf16, #tpu.memory_space<vmem>>, vector<16x128xbf16>
    %cst = arith.constant dense<0.000000e+00> : vector<2x128xf32>
    %7 = tpu.matmul %5, %6, %cst {dimension_numbers = #tpu.dot_dimension_numbers<[1], [0], [0], [1], [0, 0, 1, 1], [], []>} : vector<2x16xbf16>, vector<16x128xbf16>, vector<2x128xf32> -> vector<2x128xf32>
    %8 = arith.truncf %2 : vector<2x32xf32> to vector<2x32xbf16>
    %c0_9 = arith.constant 0 : index
    %c0_10 = arith.constant 0 : index
    %9 = vector.load %arg5[%c0_9, %c0_10] : memref<32x128xbf16, #tpu.memory_space<vmem>>, vector<32x128xbf16>
    %cst_11 = arith.constant dense<0.000000e+00> : vector<2x128xf32>
    %10 = tpu.matmul %8, %9, %cst_11 {dimension_numbers = #tpu.dot_dimension_numbers<[1], [0], [0], [1], [0, 0, 1, 1], [], []>} : vector<2x32xbf16>, vector<32x128xbf16>, vector<2x128xf32> -> vector<2x128xf32>
    %11 = arith.addf %7, %10 : vector<2x128xf32>
    %c0_12 = arith.constant 0 : index
    %c0_13 = arith.constant 0 : index
    %12 = vector.load %arg7[%c0_12, %c0_13] : memref<1x128xf32, #tpu.memory_space<vmem>>, vector<1x128xf32>
    %13 = vector.broadcast %12 : vector<1x128xf32> to vector<2x128xf32>
    %14 = arith.addf %11, %13 : vector<2x128xf32>
    %15 = vector.extract_strided_slice %14 {offsets = [0, 0], sizes = [2, 32], strides = [1, 1]} : vector<2x128xf32> to vector<2x32xf32>
    %16 = arith.negf %15 : vector<2x32xf32>
    %17 = math.exp %16 : vector<2x32xf32>
    %cst_14 = arith.constant 1.000000e+00 : f32
    %18 = vector.broadcast %cst_14 : f32 to vector<2x32xf32>
    %19 = arith.addf %18, %17 : vector<2x32xf32>
    %20 = arith.divf %18, %19 : vector<2x32xf32>
    %21 = vector.extract_strided_slice %14 {offsets = [0, 32], sizes = [2, 32], strides = [1, 1]} : vector<2x128xf32> to vector<2x32xf32>
    %22 = arith.negf %21 : vector<2x32xf32>
    %23 = math.exp %22 : vector<2x32xf32>
    %cst_15 = arith.constant 1.000000e+00 : f32
    %24 = vector.broadcast %cst_15 : f32 to vector<2x32xf32>
    %25 = arith.addf %24, %23 : vector<2x32xf32>
    %26 = arith.divf %24, %25 : vector<2x32xf32>
    %27 = vector.extract_strided_slice %14 {offsets = [0, 64], sizes = [2, 32], strides = [1, 1]} : vector<2x128xf32> to vector<2x32xf32>
    %28 = math.tanh %27 : vector<2x32xf32>
    %29 = vector.extract_strided_slice %14 {offsets = [0, 96], sizes = [2, 32], strides = [1, 1]} : vector<2x128xf32> to vector<2x32xf32>
    %30 = arith.negf %29 : vector<2x32xf32>
    %31 = math.exp %30 : vector<2x32xf32>
    %cst_16 = arith.constant 1.000000e+00 : f32
    %32 = vector.broadcast %cst_16 : f32 to vector<2x32xf32>
    %33 = arith.addf %32, %31 : vector<2x32xf32>
    %34 = arith.divf %32, %33 : vector<2x32xf32>
    %35 = arith.mulf %26, %4 : vector<2x32xf32>
    %36 = arith.mulf %20, %28 : vector<2x32xf32>
    %37 = arith.addf %35, %36 : vector<2x32xf32>
    %38 = math.tanh %37 : vector<2x32xf32>
    %39 = arith.mulf %34, %38 : vector<2x32xf32>
    %c0_17 = arith.constant 0 : index
    %c0_18 = arith.constant 0 : index
    %c0_19 = arith.constant 0 : index
    %40 = vector.load %arg13[%c0_17, %c0_18, %c0_19] : memref<2x2x32xf32, #tpu.memory_space<vmem>>, vector<1x2x32xf32>
    %41 = vector.shape_cast %40 : vector<1x2x32xf32> to vector<2x32xf32>
    %42 = vector.shape_cast %37 : vector<2x32xf32> to vector<1x2x32xf32>
    tpu.vector_store %arg13[%c0_17, %c0_18, %c0_19], %42 {strides = array<i32>} : memref<2x2x32xf32, #tpu.memory_space<vmem>>, vector<1x2x32xf32>,
    %c0_20 = arith.constant 0 : index
    %c0_21 = arith.constant 0 : index
    %c0_22 = arith.constant 0 : index
    %43 = vector.load %arg12[%c0_20, %c0_21, %c0_22] : memref<2x2x32xf32, #tpu.memory_space<vmem>>, vector<1x2x32xf32>
    %44 = vector.shape_cast %43 : vector<1x2x32xf32> to vector<2x32xf32>
    %45 = vector.shape_cast %39 : vector<2x32xf32> to vector<1x2x32xf32>
    tpu.vector_store %arg12[%c0_20, %c0_21, %c0_22], %45 {strides = array<i32>} : memref<2x2x32xf32, #tpu.memory_space<vmem>>, vector<1x2x32xf32>,
    %c1 = arith.constant 1 : index
    %c0_23 = arith.constant 0 : index
    %c0_24 = arith.constant 0 : index
    %46 = vector.load %arg1[%c1, %c0_23, %c0_24] : memref<2x2x32xf32, #tpu.memory_space<vmem>>, vector<1x2x32xf32>
    %47 = vector.shape_cast %46 : vector<1x2x32xf32> to vector<2x32xf32>
    %c1_25 = arith.constant 1 : index
    %c0_26 = arith.constant 0 : index
    %c0_27 = arith.constant 0 : index
    %48 = vector.load %arg2[%c1_25, %c0_26, %c0_27] : memref<2x2x32xf32, #tpu.memory_space<vmem>>, vector<1x2x32xf32>
    %49 = vector.shape_cast %48 : vector<1x2x32xf32> to vector<2x32xf32>
    %50 = arith.truncf %39 : vector<2x32xf32> to vector<2x32xbf16>
    %c0_28 = arith.constant 0 : index
    %c0_29 = arith.constant 0 : index
    %51 = vector.load %arg4[%c0_28, %c0_29] : memref<32x128xbf16, #tpu.memory_space<vmem>>, vector<32x128xbf16>
    %cst_30 = arith.constant dense<0.000000e+00> : vector<2x128xf32>
    %52 = tpu.matmul %50, %51, %cst_30 {dimension_numbers = #tpu.dot_dimension_numbers<[1], [0], [0], [1], [0, 0, 1, 1], [], []>} : vector<2x32xbf16>, vector<32x128xbf16>, vector<2x128xf32> -> vector<2x128xf32>
    %53 = arith.truncf %47 : vector<2x32xf32> to vector<2x32xbf16>
    %c0_31 = arith.constant 0 : index
    %c0_32 = arith.constant 0 : index
    %54 = vector.load %arg6[%c0_31, %c0_32] : memref<32x128xbf16, #tpu.memory_space<vmem>>, vector<32x128xbf16>
    %cst_33 = arith.constant dense<0.000000e+00> : vector<2x128xf32>
    %55 = tpu.matmul %53, %54, %cst_33 {dimension_numbers = #tpu.dot_dimension_numbers<[1], [0], [0], [1], [0, 0, 1, 1], [], []>} : vector<2x32xbf16>, vector<32x128xbf16>, vector<2x128xf32> -> vector<2x128xf32>
    %56 = arith.addf %52, %55 : vector<2x128xf32>
    %c0_34 = arith.constant 0 : index
    %c0_35 = arith.constant 0 : index
    %57 = vector.load %arg8[%c0_34, %c0_35] : memref<1x128xf32, #tpu.memory_space<vmem>>, vector<1x128xf32>
    %58 = vector.broadcast %57 : vector<1x128xf32> to vector<2x128xf32>
    %59 = arith.addf %56, %58 : vector<2x128xf32>
    %60 = vector.extract_strided_slice %59 {offsets = [0, 0], sizes = [2, 32], strides = [1, 1]} : vector<2x128xf32> to vector<2x32xf32>
    %61 = arith.negf %60 : vector<2x32xf32>
    %62 = math.exp %61 : vector<2x32xf32>
    %cst_36 = arith.constant 1.000000e+00 : f32
    %63 = vector.broadcast %cst_36 : f32 to vector<2x32xf32>
    %64 = arith.addf %63, %62 : vector<2x32xf32>
    %65 = arith.divf %63, %64 : vector<2x32xf32>
    %66 = vector.extract_strided_slice %59 {offsets = [0, 32], sizes = [2, 32], strides = [1, 1]} : vector<2x128xf32> to vector<2x32xf32>
    %67 = arith.negf %66 : vector<2x32xf32>
    %68 = math.exp %67 : vector<2x32xf32>
    %cst_37 = arith.constant 1.000000e+00 : f32
    %69 = vector.broadcast %cst_37 : f32 to vector<2x32xf32>
    %70 = arith.addf %69, %68 : vector<2x32xf32>
    %71 = arith.divf %69, %70 : vector<2x32xf32>
    %72 = vector.extract_strided_slice %59 {offsets = [0, 64], sizes = [2, 32], strides = [1, 1]} : vector<2x128xf32> to vector<2x32xf32>
    %73 = math.tanh %72 : vector<2x32xf32>
    %74 = vector.extract_strided_slice %59 {offsets = [0, 96], sizes = [2, 32], strides = [1, 1]} : vector<2x128xf32> to vector<2x32xf32>
    %75 = arith.negf %74 : vector<2x32xf32>
    %76 = math.exp %75 : vector<2x32xf32>
    %cst_38 = arith.constant 1.000000e+00 : f32
    %77 = vector.broadcast %cst_38 : f32 to vector<2x32xf32>
    %78 = arith.addf %77, %76 : vector<2x32xf32>
    %79 = arith.divf %77, %78 : vector<2x32xf32>
    %80 = arith.mulf %71, %49 : vector<2x32xf32>
    %81 = arith.mulf %65, %73 : vector<2x32xf32>
    %82 = arith.addf %80, %81 : vector<2x32xf32>
    %83 = math.tanh %82 : vector<2x32xf32>
    %84 = arith.mulf %79, %83 : vector<2x32xf32>
    %c1_39 = arith.constant 1 : index
    %c0_40 = arith.constant 0 : index
    %c0_41 = arith.constant 0 : index
    %85 = vector.load %arg13[%c1_39, %c0_40, %c0_41] : memref<2x2x32xf32, #tpu.memory_space<vmem>>, vector<1x2x32xf32>
    %86 = vector.shape_cast %85 : vector<1x2x32xf32> to vector<2x32xf32>
    %87 = vector.shape_cast %82 : vector<2x32xf32> to vector<1x2x32xf32>
    tpu.vector_store %arg13[%c1_39, %c0_40, %c0_41], %87 {strides = array<i32>} : memref<2x2x32xf32, #tpu.memory_space<vmem>>, vector<1x2x32xf32>,
    %c1_42 = arith.constant 1 : index
    %c0_43 = arith.constant 0 : index
    %c0_44 = arith.constant 0 : index
    %88 = vector.load %arg12[%c1_42, %c0_43, %c0_44] : memref<2x2x32xf32, #tpu.memory_space<vmem>>, vector<1x2x32xf32>
    %89 = vector.shape_cast %88 : vector<1x2x32xf32> to vector<2x32xf32>
    %90 = vector.shape_cast %84 : vector<2x32xf32> to vector<1x2x32xf32>
    tpu.vector_store %arg12[%c1_42, %c0_43, %c0_44], %90 {strides = array<i32>} : memref<2x2x32xf32, #tpu.memory_space<vmem>>, vector<1x2x32xf32>,
    %91 = arith.truncf %84 : vector<2x32xf32> to vector<2x32xbf16>
    %c0_45 = arith.constant 0 : index
    %c0_46 = arith.constant 0 : index
    %92 = vector.load %arg9[%c0_45, %c0_46] : memref<32x16xbf16, #tpu.memory_space<vmem>>, vector<32x16xbf16>
    %cst_47 = arith.constant dense<0.000000e+00> : vector<2x16xf32>
    %93 = tpu.matmul %91, %92, %cst_47 {dimension_numbers = #tpu.dot_dimension_numbers<[1], [0], [0], [1], [0, 0, 1, 1], [], []>} : vector<2x32xbf16>, vector<32x16xbf16>, vector<2x16xf32> -> vector<2x16xf32>
    %c0_48 = arith.constant 0 : index
    %c0_49 = arith.constant 0 : index
    %94 = vector.load %arg10[%c0_48, %c0_49] : memref<1x16xf32, #tpu.memory_space<vmem>>, vector<1x16xf32>
    %95 = vector.broadcast %94 : vector<1x16xf32> to vector<2x16xf32>
    %96 = arith.addf %93, %95 : vector<2x16xf32>
    %c0_50 = arith.constant 0 : index
    %c0_51 = arith.constant 0 : index
    %97 = vector.load %arg11[%c0_50, %c0_51] : memref<2x16xf32, #tpu.memory_space<vmem>>, vector<2x16xf32>
    tpu.vector_store %arg11[%c0_50, %c0_51], %96 {strides = array<i32>} : memref<2x16xf32, #tpu.memory_space<vmem>>, vector<2x16xf32>,
    return
  }
}

</mosaic_0001>

<llo_original>
// kernel: decoder_forward.1
$region0: #{decoder_forward.1}
  #allocation0 [shape = 'u32[]', space=smem, size = 0x4, offset = 0x4, fixed_abs, tag = 'smem constant byte address 0x4 - core index']
  #allocation1 [shape = 'u32[144,128]{1,0:T(1,128)}', space=vmem, size = 0x12000, scoped, tag = 'internal scratch']
  %s0 = inlined_call_operand.vmem [shape: f32[2,16], index: 0, kind: input, shape index: {}]
  %s1 = inlined_call_operand.hbm [shape: f32[2,2,32], index: 1, kind: input, shape index: {}, may-alias: {1,12}]
  %s2 = inlined_call_operand.hbm [shape: f32[2,2,32], index: 2, kind: input, shape index: {}, may-alias: {2,13}]
  %s3 = inlined_call_operand.hbm [shape: bf16[16,128], index: 3, kind: input, shape index: {}]
  %s4 = inlined_call_operand.vmem [shape: bf16[32,128], index: 4, kind: input, shape index: {}]
  %s5 = inlined_call_operand.hbm [shape: bf16[32,128], index: 5, kind: input, shape index: {}]
  %s6 = inlined_call_operand.vmem [shape: bf16[32,128], index: 6, kind: input, shape index: {}]
  %s7 = inlined_call_operand.hbm [shape: f32[1,128], index: 7, kind: input, shape index: {}]
  %s8 = inlined_call_operand.hbm [shape: f32[1,128], index: 8, kind: input, shape index: {}]
  %s9 = inlined_call_operand.vmem [shape: bf16[32,16], index: 9, kind: input, shape index: {}]
  %s10 = inlined_call_operand.hbm [shape: f32[1,16], index: 10, kind: input, shape index: {}]
  %s11 = inlined_call_operand.hbm [shape: f32[2,16], index: 11, kind: output, shape index: {0}]
  %s12 = inlined_call_operand.hbm [shape: f32[2,2,32], index: 12, kind: output, shape index: {1}, may-alias: {1,12}]
  %s13 = inlined_call_operand.hbm [shape: f32[2,2,32], index: 13, kind: output, shape index: {2}, may-alias: {2,13}]
  %14 = xla_tuple %s11, %s12, %s13
  %s15 = sld [smem:[#allocation0]]
  $region98: #{decoder_forward.1} parent=0
    _
  %s17 = ssub.s32 1, %s15
  %s18 = scalar_select 0, %s17, %s15
  $region1: #{decoder_forward.1} parent=0
    #allocation2 [shape = 'u8[2048]{0}', space=vmem, size = 0x800, scoped, tag = 'input window, operand 1, single buffered']
    #allocation3 [shape = 's32[1]{0}', space=sflag, size = 0x4, scoped, tag = 'scoped memory for decoder_forward.1']
    #allocation4 [shape = 's32[1]{0}', space=sflag, size = 0x4, scoped, tag = 'scoped memory for decoder_forward.1']
    #allocation5 [shape = 'u8[2048]{0}', space=vmem, size = 0x800, scoped, tag = 'input window, operand 2, single buffered']
    #allocation6 [shape = 's32[1]{0}', space=sflag, size = 0x4, scoped, tag = 'scoped memory for decoder_forward.1']
    #allocation7 [shape = 'u8[4096]{0}', space=vmem, size = 0x1000, scoped, tag = 'input window, operand 3, single buffered']
    #allocation8 [shape = 'u8[8192]{0}', space=vmem, size = 0x2000, scoped, tag = 'input window, operand 5, single buffered']
    #allocation9 [shape = 's32[1]{0}', space=sflag, size = 0x4, scoped, tag = 'scoped memory for decoder_forward.1']
    #allocation10 [shape = 'u8[512]{0}', space=vmem, size = 0x400, scoped, tag = 'input window, operand 7, single buffered']
    #allocation11 [shape = 'u8[512]{0}', space=vmem, size = 0x400, scoped, tag = 'input window, operand 8, single buffered']
    #allocation12 [shape = 's32[1]{0}', space=sflag, size = 0x4, scoped, tag = 'scoped memory for decoder_forward.1']
    #allocation13 [shape = 'u8[512]{0}', space=vmem, size = 0x400, scoped, tag = 'input window, operand 10, single buffered']
    #allocation14 [shape = 'u8[1024]{0}', space=vmem, size = 0x400, scoped, tag = 'output window, operand 0, single buffered']
    #allocation15 [shape = 'u8[2048]{0}', space=vmem, size = 0x800, scoped, tag = 'output window, operand 1, single buffered']
    #allocation16 [shape = 's32[1]{0}', space=sflag, size = 0x4, scoped, tag = 'scoped memory for decoder_forward.1']
    #allocation17 [shape = 'u8[2048]{0}', space=vmem, size = 0x800, scoped, tag = 'output window, operand 2, single buffered']
    %19 = vsyncpa [#allocation3], 0
    %20 = vsyncpa [#allocation6], 0
    %21 = vsyncpa [#allocation9], 0
    %22 = vsyncpa [#allocation12], 0
    %23 = vsyncpa [#allocation4], 0
    %24 = vsyncpa [#allocation16], 0
    // Predicated region
    $region2: #{decoder_forward.1} parent=1 // pred_check
      _
    $region3: #{decoder_forward.1} parent=1 // pred_check_branch
      %26 = sbr.rel (0) target = $region5
    $region4: #{decoder_forward.1} parent=1 // pred_region
      _
    $region5: #{decoder_forward.1} parent=1 // pred_fallthru
      _
    // Predicated region
    $region6: #{decoder_forward.1} parent=1 // pred_check
      _
    $region7: #{decoder_forward.1} parent=1 // pred_check_branch
      %28 = sbr.rel (0) target = $region9
    $region8: #{decoder_forward.1} parent=1 // pred_region
      %s30 = ssub.s32 64, 64
      %31 = vsyncadd [#allocation3], %s30
      %s32 = sshll.u32 [#allocation2], 4
      %s33 = int_to_ptr.vmem [resolvable:$true] %s32
      %38 = dma.hbm_to_vmem [thread:$0]  %s1, 64, %s33, [#allocation3], 32, 32, 2
    $region9: #{decoder_forward.1} parent=1 // pred_fallthru
      _
    // Predicated region
    $region10: #{decoder_forward.1} parent=1 // pred_check
      _
    $region11: #{decoder_forward.1} parent=1 // pred_check_branch
      %40 = sbr.rel (0) target = $region13
    $region12: #{decoder_forward.1} parent=1 // pred_region
      %s42 = ssub.s32 64, 64
      %43 = vsyncadd [#allocation6], %s42
      %s44 = sshll.u32 [#allocation5], 4
      %s45 = int_to_ptr.vmem [resolvable:$true] %s44
      %50 = dma.hbm_to_vmem [thread:$0]  %s2, 64, %s45, [#allocation6], 32, 32, 2
    $region13: #{decoder_forward.1} parent=1 // pred_fallthru
      _
    // Predicated region
    $region14: #{decoder_forward.1} parent=1 // pred_check
      _
    $region15: #{decoder_forward.1} parent=1 // pred_check_branch
      %52 = sbr.rel (0) target = $region17
    $region16: #{decoder_forward.1} parent=1 // pred_region
      %s54 = ssub.s32 128, 128
      %55 = vsyncadd [#allocation6], %s54
      %s56 = sshll.u32 [#allocation7], 4
      %s57 = int_to_ptr.vmem [resolvable:$true] %s56
      %62 = dma.hbm_to_vmem [thread:$0]  %s3, 128, %s57, [#allocation6], 64, 64, 4
    $region17: #{decoder_forward.1} parent=1 // pred_fallthru
      _
    // Predicated region
    $region18: #{decoder_forward.1} parent=1 // pred_check
      _
    $region19: #{decoder_forward.1} parent=1 // pred_check_branch
      %64 = sbr.rel (0) target = $region21
    $region20: #{decoder_forward.1} parent=1 // pred_region
      _
    $region21: #{decoder_forward.1} parent=1 // pred_fallthru
      _
    // Predicated region
    $region22: #{decoder_forward.1} parent=1 // pred_check
      _
    $region23: #{decoder_forward.1} parent=1 // pred_check_branch
      %66 = sbr.rel (0) target = $region25
    $region24: #{decoder_forward.1} parent=1 // pred_region
      %s68 = ssub.s32 256, 256
      %69 = vsyncadd [#allocation9], %s68
      %s70 = sshll.u32 [#allocation8], 4
      %s71 = int_to_ptr.vmem [resolvable:$true] %s70
      %76 = dma.hbm_to_vmem [thread:$0]  %s5, 256, %s71, [#allocation9], 64, 64, 4
    $region25: #{decoder_forward.1} parent=1 // pred_fallthru
      _
    // Predicated region
    $region26: #{decoder_forward.1} parent=1 // pred_check
      _
    $region27: #{decoder_forward.1} parent=1 // pred_check_branch
      %78 = sbr.rel (0) target = $region29
    $region28: #{decoder_forward.1} parent=1 // pred_region
      _
    $region29: #{decoder_forward.1} parent=1 // pred_fallthru
      _
    // Predicated region
    $region30: #{decoder_forward.1} parent=1 // pred_check
      _
    $region31: #{decoder_forward.1} parent=1 // pred_check_branch
      %80 = sbr.rel (0) target = $region33
    $region32: #{decoder_forward.1} parent=1 // pred_region
      %s82 = ssub.s32 16, 16
      %83 = vsyncadd [#allocation9], %s82
      %s85 = sshll.u32 [#allocation10], 4
      %s86 = int_to_ptr.vmem [resolvable:$true] %s85
      %88 = dma.hbm_to_vmem [thread:$0]  %s7, 16, %s86, [#allocation9]
    $region33: #{decoder_forward.1} parent=1 // pred_fallthru
      _
    // Predicated region
    $region34: #{decoder_forward.1} parent=1 // pred_check
      _
    $region35: #{decoder_forward.1} parent=1 // pred_check_branch
      %90 = sbr.rel (0) target = $region37
    $region36: #{decoder_forward.1} parent=1 // pred_region
      %s92 = ssub.s32 16, 16
      %93 = vsyncadd [#allocation12], %s92
      %s95 = sshll.u32 [#allocation11], 4
      %s96 = int_to_ptr.vmem [resolvable:$true] %s95
      %98 = dma.hbm_to_vmem [thread:$0]  %s8, 16, %s96, [#allocation12]
    $region37: #{decoder_forward.1} parent=1 // pred_fallthru
      _
    // Predicated region
    $region38: #{decoder_forward.1} parent=1 // pred_check
      _
    $region39: #{decoder_forward.1} parent=1 // pred_check_branch
      %100 = sbr.rel (0) target = $region41
    $region40: #{decoder_forward.1} parent=1 // pred_region
      _
    $region41: #{decoder_forward.1} parent=1 // pred_fallthru
      _
    // Predicated region
    $region42: #{decoder_forward.1} parent=1 // pred_check
      _
    $region43: #{decoder_forward.1} parent=1 // pred_check_branch
      %102 = sbr.rel (0) target = $region45
    $region44: #{decoder_forward.1} parent=1 // pred_region
      %s104 = ssub.s32 16, 16
      %105 = vsyncadd [#allocation12], %s104
      %s107 = sshll.u32 [#allocation13], 4
      %s108 = int_to_ptr.vmem [resolvable:$true] %s107
      %110 = dma.hbm_to_vmem [thread:$0]  %s10, 16, %s108, [#allocation12]
    $region45: #{decoder_forward.1} parent=1 // pred_fallthru
      _
    // Predicated region
    $region46: #{decoder_forward.1} parent=1 // pred_check
      _
    $region47: #{decoder_forward.1} parent=1 // pred_check_branch
      %112 = sbr.rel (0) target = $region49
    $region48: #{decoder_forward.1} parent=1 // pred_region
      %113 = dma.done [#allocation3], 64
    $region49: #{decoder_forward.1} parent=1 // pred_fallthru
      _
    // Predicated region
    $region50: #{decoder_forward.1} parent=1 // pred_check
      _
    $region51: #{decoder_forward.1} parent=1 // pred_check_branch
      %115 = sbr.rel (0) target = $region53
    $region52: #{decoder_forward.1} parent=1 // pred_region
      %116 = dma.done [#allocation6], 64
    $region53: #{decoder_forward.1} parent=1 // pred_fallthru
      _
    // Predicated region
    $region54: #{decoder_forward.1} parent=1 // pred_check
      _
    $region55: #{decoder_forward.1} parent=1 // pred_check_branch
      %118 = sbr.rel (0) target = $region57
    $region56: #{decoder_forward.1} parent=1 // pred_region
      %119 = dma.done [#allocation6], 128
    $region57: #{decoder_forward.1} parent=1 // pred_fallthru
      _
    // Predicated region
    $region58: #{decoder_forward.1} parent=1 // pred_check
      _
    $region59: #{decoder_forward.1} parent=1 // pred_check_branch
      %121 = sbr.rel (0) target = $region61
    $region60: #{decoder_forward.1} parent=1 // pred_region
      %122 = dma.done [#allocation9], 256
    $region61: #{decoder_forward.1} parent=1 // pred_fallthru
      _
    // Predicated region
    $region62: #{decoder_forward.1} parent=1 // pred_check
      _
    $region63: #{decoder_forward.1} parent=1 // pred_check_branch
      %124 = sbr.rel (0) target = $region65
    $region64: #{decoder_forward.1} parent=1 // pred_region
      %125 = dma.done [#allocation9], 16
    $region65: #{decoder_forward.1} parent=1 // pred_fallthru
      _
    // Predicated region
    $region66: #{decoder_forward.1} parent=1 // pred_check
      _
    $region67: #{decoder_forward.1} parent=1 // pred_check_branch
      %127 = sbr.rel (0) target = $region69
    $region68: #{decoder_forward.1} parent=1 // pred_region
      %128 = dma.done [#allocation12], 16
    $region69: #{decoder_forward.1} parent=1 // pred_fallthru
      _
    // Predicated region
    $region70: #{decoder_forward.1} parent=1 // pred_check
      _
    $region71: #{decoder_forward.1} parent=1 // pred_check_branch
      %130 = sbr.rel (0) target = $region73
    $region72: #{decoder_forward.1} parent=1 // pred_region
      %131 = dma.done [#allocation12], 16
    $region73: #{decoder_forward.1} parent=1 // pred_fallthru
      _
    %v133 = vld [vmem:[%s0] sm:$0x3]
    %v134 = vld [vmem:[#allocation2] sm:$0x3]
    %v135 = vld [vmem:[#allocation5] sm:$0x3]
    %v136 = vpack.c.bf16 %v133, %v133
    %v137 = vld [vmem:[#allocation7] sm:$0xf]
    %v138 = vld [vmem:[#allocation7 + $0x4] sm:$0xf]
    %v139 = vpack.c.bf16 %v134, %v134
    %v140 = vld [vmem:[#allocation8] sm:$0xf]
    %v141 = vld [vmem:[#allocation8 + $0x4] sm:$0xf]
    %v142 = vld [vmem:[#allocation8 + $0x8] sm:$0xf]
    %v143 = vld [vmem:[#allocation8 + $0xc] sm:$0xf]
    %v148 = vunpack.c.l.b16 %v140
    %v149 = vunpack.c.l.b16 %v141
    %v150 = vunpack.c.l.b16 %v142
    %v151 = vunpack.c.l.b16 %v143
    %v152 = vpack.c.b16 %v149, %v148
    %v153 = vpack.c.b16 %v151, %v150
    %vm156 = vcmask 261120
    %v158 = vsel %vm156, %v139, 0
    %160 = vmatprep.subr.bf16.mxu0 0
    %161 = vmatpush1.bf16.msra.mxu0 0
    %162 = vmatprep.subr.bf16.mxu0 0
    %163 = vmatpush1.bf16.msra.mxu0 0
    %164 = vmatprep.subr.bf16.mxu0 0
    %165 = vmatpush1.bf16.msra.mxu0 0
    %166 = vmatprep.subr.bf16.mxu0 0
    %167 = vmatpush1.bf16.msra.mxu0 0
    %168 = vmatprep.subr.bf16.mxu0 0
    %169 = vmatpush1.bf16.msra.mxu0 0
    %170 = vmatprep.subr.bf16.mxu0 0
    %171 = vmatpush1.bf16.msra.mxu0 0
    %172 = vmatprep.subr.bf16.mxu0 0
    %173 = vmatpush1.bf16.msra.mxu0 %v153
    %174 = vmatprep.subr.bf16.mxu0 0
    %175 = vmatpush1.bf16.msra.mxu0 %v152
    %176 = vmatprep.subr.bf16.mxu0 0
    %177 = vmatpush2.bf16.msra.mxu0 0
    %178 = vmatprep.subr.bf16.mxu0 0
    %179 = vmatpush2.bf16.msra.mxu0 0
    %180 = vmatprep.subr.bf16.mxu0 0
    %181 = vmatpush2.bf16.msra.mxu0 0
    %182 = vmatprep.subr.bf16.mxu0 0
    %183 = vmatpush2.bf16.msra.mxu0 0
    %184 = vmatprep.subr.bf16.mxu0 0
    %185 = vmatpush2.bf16.msra.mxu0 0
    %186 = vmatprep.subr.bf16.mxu0 0
    %187 = vmatpush2.bf16.msra.mxu0 0
    %188 = vmatprep.subr.bf16.mxu0 0
    %189 = vmatpush2.bf16.msra.mxu0 0
    %190 = vmatprep.subr.bf16.mxu0 0
    %191 = vmatpush2.bf16.msra.mxu0 0
    %192 = vmatprep.mubr.bf16.mxu0 0
    %193 = vmatmul.mubr.bf16.gmra.mxu0 %v158
    %v194 = vpop.f32.mrf.mxu0
    %v195 = vadd.f32 0.0, %v194
    %v196 = vpop.f32.mrf.mxu0
    %v197 = vpop.f32.mrf.mxu0
    %v198 = vpop.f32.mrf.mxu0
    %199 = vdwg.mxu0
    %v202 = vunpack.c.l.b16 %v137
    %v203 = vunpack.c.l.b16 %v138
    %v204 = vpack.c.b16 %v203, %v202
    %vm206 = vcmask 130048
    %v208 = vsel %vm206, %v136, 0
    %210 = vmatprep.subr.bf16.mxu0 0
    %211 = vmatpush1.bf16.msra.mxu0 0
    %212 = vmatprep.subr.bf16.mxu0 0
    %213 = vmatpush1.bf16.msra.mxu0 0
    %214 = vmatprep.subr.bf16.mxu0 0
    %215 = vmatpush1.bf16.msra.mxu0 0
    %216 = vmatprep.subr.bf16.mxu0 0
    %217 = vmatpush1.bf16.msra.mxu0 0
    %218 = vmatprep.subr.bf16.mxu0 0
    %219 = vmatpush1.bf16.msra.mxu0 0
    %220 = vmatprep.subr.bf16.mxu0 0
    %221 = vmatpush1.bf16.msra.mxu0 0
    %222 = vmatprep.subr.bf16.mxu0 0
    %223 = vmatpush1.bf16.msra.mxu0 0
    %224 = vmatprep.subr.bf16.mxu0 0
    %225 = vmatpush1.bf16.msra.mxu0 %v204
    %226 = vmatprep.subr.bf16.mxu0 0
    %227 = vmatpush2.bf16.msra.mxu0 0
    %228 = vmatprep.subr.bf16.mxu0 0
    %229 = vmatpush2.bf16.msra.mxu0 0
    %230 = vmatprep.subr.bf16.mxu0 0
    %231 = vmatpush2.bf16.msra.mxu0 0
    %232 = vmatprep.subr.bf16.mxu0 0
    %233 = vmatpush2.bf16.msra.mxu0 0
    %234 = vmatprep.subr.bf16.mxu0 0
    %235 = vmatpush2.bf16.msra.mxu0 0
    %236 = vmatprep.subr.bf16.mxu0 0
    %237 = vmatpush2.bf16.msra.mxu0 0
    %238 = vmatprep.subr.bf16.mxu0 0
    %239 = vmatpush2.bf16.msra.mxu0 0
    %240 = vmatprep.subr.bf16.mxu0 0
    %241 = vmatpush2.bf16.msra.mxu0 0
    %242 = vmatprep.mubr.bf16.mxu0 0
    %243 = vmatmul.mubr.bf16.gmra.mxu0 %v208
    %v244 = vpop.f32.mrf.mxu0
    %v245 = vadd.f32 %v195, %v244
    %v246 = vpop.f32.mrf.mxu0
    %v247 = vpop.f32.mrf.mxu0
    %v248 = vpop.f32.mrf.mxu0
    %249 = vdwg.mxu0
    %v250 = vld [vmem:[#allocation10] sm:$0x1]
    %v252 = vlaneseq
    %v253 = vshrl.u32 %v252, 7
    %v254 = vsub.s32 0, %v253
    %v255 = vrot.slane %v250, %v254
    %v257 = vadd.f32 %v245, %v255
    %v258 = vxor.u32 %v257, 2147483648
    %v259 = vmul.f32 %v258, 1.442695
    %v260 = vpow.pop %v259
    %v261 = vadd.f32 %v260, 1.0
    %v262 = vrcp.pop %v261
    %v263 = vmul.f32 1.0, %v262
    %v264 = vtanh.pop %v257
    %266 = vrot.lane.b32.xlu0 %v135, 32
    %v267 = vpop.permute.xlu0 %266
    %v269 = vmul.f32 %v263, %v267
    %271 = vrot.lane.b32.xlu0 %v264, 64
    %v272 = vpop.permute.xlu0 %271
    %v274 = vmul.f32 %v263, %v272
    %276 = vrot.lane.b32.xlu0 %v274, 32
    %v277 = vpop.permute.xlu0 %276
    %v279 = vadd.f32 %v269, %v277
    %v280 = vtanh.pop %v279
    %282 = vrot.lane.b32.xlu0 %v280, 64
    %v283 = vpop.permute.xlu0 %282
    %v285 = vmul.f32 %v263, %v283
    %287 = vrot.lane.b32.xlu0 %v279, 96
    %v288 = vpop.permute.xlu0 %287
    %vm290 = vcmask 254976
    %291 = vst.msk [vmem:[#allocation17] sm:$0x3] %vm290, %v288
    %293 = vrot.lane.b32.xlu0 %v285, 32
    %v294 = vpop.permute.xlu0 %293
    %296 = vst.msk [vmem:[#allocation15] sm:$0x3] %vm290, %v294
    %s297 = scalar_lea.vmem [#allocation2], 2
    %v298 = vld [vmem:[%s297] sm:$0x3]
    %s299 = scalar_lea.vmem [#allocation5], 2
    %v300 = vld [vmem:[%s299] sm:$0x3]
    %v301 = vpack.c.bf16 %v285, %v285
    %v302 = vld [vmem:[%s4] sm:$0xf]
    %v303 = vld [vmem:[%s4 + $0x4] sm:$0xf]
    %v304 = vld [vmem:[%s4 + $0x8] sm:$0xf]
    %v305 = vld [vmem:[%s4 + $0xc] sm:$0xf]
    %v306 = vpack.c.bf16 %v298, %v298
    %v307 = vld [vmem:[%s6] sm:$0xf]
    %v308 = vld [vmem:[%s6 + $0x4] sm:$0xf]
    %v309 = vld [vmem:[%s6 + $0x8] sm:$0xf]
    %v310 = vld [vmem:[%s6 + $0xc] sm:$0xf]
    %v315 = vunpack.c.l.b16 %v307
    %v316 = vunpack.c.l.b16 %v308
    %v317 = vunpack.c.l.b16 %v309
    %v318 = vunpack.c.l.b16 %v310
    %v319 = vpack.c.b16 %v316, %v315
    %v320 = vpack.c.b16 %v318, %v317
    %v324 = vsel %vm156, %v306, 0
    %326 = vmatprep.subr.bf16.mxu0 0
    %327 = vmatpush1.bf16.msra.mxu0 0
    %328 = vmatprep.subr.bf16.mxu0 0
    %329 = vmatpush1.bf16.msra.mxu0 0
    %330 = vmatprep.subr.bf16.mxu0 0
    %331 = vmatpush1.bf16.msra.mxu0 0
    %332 = vmatprep.subr.bf16.mxu0 0
    %333 = vmatpush1.bf16.msra.mxu0 0
    %334 = vmatprep.subr.bf16.mxu0 0
    %335 = vmatpush1.bf16.msra.mxu0 0
    %336 = vmatprep.subr.bf16.mxu0 0
    %337 = vmatpush1.bf16.msra.mxu0 0
    %338 = vmatprep.subr.bf16.mxu0 0
    %339 = vmatpush1.bf16.msra.mxu0 %v320
    %340 = vmatprep.subr.bf16.mxu0 0
    %341 = vmatpush1.bf16.msra.mxu0 %v319
    %342 = vmatprep.subr.bf16.mxu0 0
    %343 = vmatpush2.bf16.msra.mxu0 0
    %344 = vmatprep.subr.bf16.mxu0 0
    %345 = vmatpush2.bf16.msra.mxu0 0
    %346 = vmatprep.subr.bf16.mxu0 0
    %347 = vmatpush2.bf16.msra.mxu0 0
    %348 = vmatprep.subr.bf16.mxu0 0
    %349 = vmatpush2.bf16.msra.mxu0 0
    %350 = vmatprep.subr.bf16.mxu0 0
    %351 = vmatpush2.bf16.msra.mxu0 0
    %352 = vmatprep.subr.bf16.mxu0 0
    %353 = vmatpush2.bf16.msra.mxu0 0
    %354 = vmatprep.subr.bf16.mxu0 0
    %355 = vmatpush2.bf16.msra.mxu0 0
    %356 = vmatprep.subr.bf16.mxu0 0
    %357 = vmatpush2.bf16.msra.mxu0 0
    %358 = vmatprep.mubr.bf16.mxu0 0
    %359 = vmatmul.mubr.bf16.gmra.mxu0 %v324
    %v360 = vpop.f32.mrf.mxu0
    %v361 = vadd.f32 0.0, %v360
    %v362 = vpop.f32.mrf.mxu0
    %v363 = vpop.f32.mrf.mxu0
    %v364 = vpop.f32.mrf.mxu0
    %365 = vdwg.mxu0
    %367 = vrot.lane.b32.xlu0 %v301, 32
    %v368 = vpop.permute.xlu0 %367
    %v373 = vunpack.c.l.b16 %v302
    %v374 = vunpack.c.l.b16 %v303
    %v375 = vunpack.c.l.b16 %v304
    %v376 = vunpack.c.l.b16 %v305
    %v377 = vpack.c.b16 %v374, %v373
    %v378 = vpack.c.b16 %v376, %v375
    %v382 = vsel %vm156, %v368, 0
    %384 = vmatprep.subr.bf16.mxu0 0
    %385 = vmatpush1.bf16.msra.mxu0 0
    %386 = vmatprep.subr.bf16.mxu0 0
    %387 = vmatpush1.bf16.msra.mxu0 0
    %388 = vmatprep.subr.bf16.mxu0 0
    %389 = vmatpush1.bf16.msra.mxu0 0
    %390 = vmatprep.subr.bf16.mxu0 0
    %391 = vmatpush1.bf16.msra.mxu0 0
    %392 = vmatprep.subr.bf16.mxu0 0
    %393 = vmatpush1.bf16.msra.mxu0 0
    %394 = vmatprep.subr.bf16.mxu0 0
    %395 = vmatpush1.bf16.msra.mxu0 0
    %396 = vmatprep.subr.bf16.mxu0 0
    %397 = vmatpush1.bf16.msra.mxu0 %v378
    %398 = vmatprep.subr.bf16.mxu0 0
    %399 = vmatpush1.bf16.msra.mxu0 %v377
    %400 = vmatprep.subr.bf16.mxu0 0
    %401 = vmatpush2.bf16.msra.mxu0 0
    %402 = vmatprep.subr.bf16.mxu0 0
    %403 = vmatpush2.bf16.msra.mxu0 0
    %404 = vmatprep.subr.bf16.mxu0 0
    %405 = vmatpush2.bf16.msra.mxu0 0
    %406 = vmatprep.subr.bf16.mxu0 0
    %407 = vmatpush2.bf16.msra.mxu0 0
    %408 = vmatprep.subr.bf16.mxu0 0
    %409 = vmatpush2.bf16.msra.mxu0 0
    %410 = vmatprep.subr.bf16.mxu0 0
    %411 = vmatpush2.bf16.msra.mxu0 0
    %412 = vmatprep.subr.bf16.mxu0 0
    %413 = vmatpush2.bf16.msra.mxu0 0
    %414 = vmatprep.subr.bf16.mxu0 0
    %415 = vmatpush2.bf16.msra.mxu0 0
    %416 = vmatprep.mubr.bf16.mxu0 0
    %417 = vmatmul.mubr.bf16.gmra.mxu0 %v382
    %v418 = vpop.f32.mrf.mxu0
    %v419 = vadd.f32 %v361, %v418
    %v420 = vpop.f32.mrf.mxu0
    %v421 = vpop.f32.mrf.mxu0
    %v422 = vpop.f32.mrf.mxu0
    %423 = vdwg.mxu0
    %v424 = vld [vmem:[#allocation11] sm:$0x1]
    %v426 = vlaneseq
    %v427 = vshrl.u32 %v426, 7
    %v428 = vsub.s32 0, %v427
    %v429 = vrot.slane %v424, %v428
    %v431 = vadd.f32 %v419, %v429
    %v432 = vxor.u32 %v431, 2147483648
    %v433 = vmul.f32 %v432, 1.442695
    %v434 = vpow.pop %v433
    %v435 = vadd.f32 %v434, 1.0
    %v436 = vrcp.pop %v435
    %v437 = vmul.f32 1.0, %v436
    %v438 = vtanh.pop %v431
    %440 = vrot.lane.b32.xlu0 %v300, 32
    %v441 = vpop.permute.xlu0 %440
    %v443 = vmul.f32 %v437, %v441
    %445 = vrot.lane.b32.xlu0 %v438, 64
    %v446 = vpop.permute.xlu0 %445
    %v448 = vmul.f32 %v437, %v446
    %450 = vrot.lane.b32.xlu0 %v448, 32
    %v451 = vpop.permute.xlu0 %450
    %v453 = vadd.f32 %v443, %v451
    %v454 = vtanh.pop %v453
    %456 = vrot.lane.b32.xlu0 %v454, 64
    %v457 = vpop.permute.xlu0 %456
    %v459 = vmul.f32 %v437, %v457
    %461 = vrot.lane.b32.xlu0 %v453, 96
    %v462 = vpop.permute.xlu0 %461
    %s464 = scalar_lea.vmem [#allocation17], 2
    %465 = vst.msk [vmem:[%s464] sm:$0x3] %vm290, %v462
    %467 = vrot.lane.b32.xlu0 %v459, 32
    %v468 = vpop.permute.xlu0 %467
    %s470 = scalar_lea.vmem [#allocation15], 2
    %471 = vst.msk [vmem:[%s470] sm:$0x3] %vm290, %v468
    %v472 = vpack.c.bf16 %v459, %v459
    %v473 = vld [vmem:[%s9] sm:$0xf]
    %v474 = vld [vmem:[%s9 + $0x4] sm:$0xf]
    %v475 = vld [vmem:[%s9 + $0x8] sm:$0xf]
    %v476 = vld [vmem:[%s9 + $0xc] sm:$0xf]
    %v477 = vld [vmem:[#allocation13] sm:$0x1]
    %v479 = vlaneseq
    %v480 = vshrl.u32 %v479, 7
    %v481 = vsub.s32 0, %v480
    %v482 = vrot.slane %v477, %v481
    %485 = vrot.lane.b32.xlu0 %v472, 32
    %v486 = vpop.permute.xlu0 %485
    %v491 = vunpack.c.l.b16 %v473
    %v492 = vunpack.c.l.b16 %v474
    %v493 = vunpack.c.l.b16 %v475
    %v494 = vunpack.c.l.b16 %v476
    %v495 = vpack.c.b16 %v492, %v491
    %v496 = vpack.c.b16 %v494, %v493
    %v500 = vsel %vm156, %v486, 0
    %502 = vmatprep.subr.bf16.mxu0 0
    %503 = vmatpush1.bf16.msra.mxu0 0
    %504 = vmatprep.subr.bf16.mxu0 0
    %505 = vmatpush1.bf16.msra.mxu0 0
    %506 = vmatprep.subr.bf16.mxu0 0
    %507 = vmatpush1.bf16.msra.mxu0 0
    %508 = vmatprep.subr.bf16.mxu0 0
    %509 = vmatpush1.bf16.msra.mxu0 0
    %510 = vmatprep.subr.bf16.mxu0 0
    %511 = vmatpush1.bf16.msra.mxu0 0
    %512 = vmatprep.subr.bf16.mxu0 0
    %513 = vmatpush1.bf16.msra.mxu0 0
    %514 = vmatprep.subr.bf16.mxu0 0
    %515 = vmatpush1.bf16.msra.mxu0 %v496
    %516 = vmatprep.subr.bf16.mxu0 0
    %517 = vmatpush1.bf16.msra.mxu0 %v495
    %518 = vmatprep.subr.bf16.mxu0 0
    %519 = vmatpush2.bf16.msra.mxu0 0
    %520 = vmatprep.subr.bf16.mxu0 0
    %521 = vmatpush2.bf16.msra.mxu0 0
    %522 = vmatprep.subr.bf16.mxu0 0
    %523 = vmatpush2.bf16.msra.mxu0 0
    %524 = vmatprep.subr.bf16.mxu0 0
    %525 = vmatpush2.bf16.msra.mxu0 0
    %526 = vmatprep.subr.bf16.mxu0 0
    %527 = vmatpush2.bf16.msra.mxu0 0
    %528 = vmatprep.subr.bf16.mxu0 0
    %529 = vmatpush2.bf16.msra.mxu0 0
    %530 = vmatprep.subr.bf16.mxu0 0
    %531 = vmatpush2.bf16.msra.mxu0 0
    %532 = vmatprep.subr.bf16.mxu0 0
    %533 = vmatpush2.bf16.msra.mxu0 0
    %534 = vmatprep.mubr.bf16.mxu0 0
    %535 = vmatmul.mubr.bf16.gmra.mxu0 %v500
    %v536 = vpop.f32.mrf.mxu0
    %v537 = vadd.f32 %v482, %v536
    %v538 = vpop.f32.mrf.mxu0
    %v539 = vpop.f32.mrf.mxu0
    %v540 = vpop.f32.mrf.mxu0
    %541 = vdwg.mxu0
    %vm542 = vcmask 123904
    %543 = vst.msk [vmem:[#allocation14] sm:$0x3] %vm542, %v537
    // Predicated region
    $region74: #{decoder_forward.1} parent=1 // pred_check
      _
    $region75: #{decoder_forward.1} parent=1 // pred_check_branch
      %545 = sbr.rel (0) target = $region77
    $region76: #{decoder_forward.1} parent=1 // pred_region
      %s547 = ssub.s32 32, 32
      %548 = vsyncadd [#allocation4], %s547
      %s550 = sshll.u32 [#allocation14], 4
      %s551 = int_to_ptr.vmem [resolvable:$true] %s550
      %553 = dma.vmem_to_hbm [thread:$0]  %s551, 32, %s11, [#allocation4]
    $region77: #{decoder_forward.1} parent=1 // pred_fallthru
      _
    // Predicated region
    $region78: #{decoder_forward.1} parent=1 // pred_check
      _
    $region79: #{decoder_forward.1} parent=1 // pred_check_branch
      %555 = sbr.rel (0) target = $region81
    $region80: #{decoder_forward.1} parent=1 // pred_region
      %s557 = ssub.s32 64, 64
      %558 = vsyncadd [#allocation16], %s557
      %s559 = sshll.u32 [#allocation15], 4
      %s560 = int_to_ptr.vmem [resolvable:$true] %s559
      %565 = dma.vmem_to_hbm [thread:$0]  %s560, 64, %s12, [#allocation16], 32, 32, 2
    $region81: #{decoder_forward.1} parent=1 // pred_fallthru
      _
    // Predicated region
    $region82: #{decoder_forward.1} parent=1 // pred_check
      _
    $region83: #{decoder_forward.1} parent=1 // pred_check_branch
      %567 = sbr.rel (0) target = $region85
    $region84: #{decoder_forward.1} parent=1 // pred_region
      %s569 = ssub.s32 64, 64
      %570 = vsyncadd [#allocation16], %s569
      %s571 = sshll.u32 [#allocation17], 4
      %s572 = int_to_ptr.vmem [resolvable:$true] %s571
      %577 = dma.vmem_to_hbm [thread:$0]  %s572, 64, %s13, [#allocation16], 32, 32, 2
    $region85: #{decoder_forward.1} parent=1 // pred_fallthru
      _
    // Predicated region
    $region86: #{decoder_forward.1} parent=1 // pred_check
      _
    $region87: #{decoder_forward.1} parent=1 // pred_check_branch
      %579 = sbr.rel (0) target = $region89
    $region88: #{decoder_forward.1} parent=1 // pred_region
      %580 = dma.done [#allocation4], 32
    $region89: #{decoder_forward.1} parent=1 // pred_fallthru
      _
    // Predicated region
    $region90: #{decoder_forward.1} parent=1 // pred_check
      _
    $region91: #{decoder_forward.1} parent=1 // pred_check_branch
      %582 = sbr.rel (0) target = $region93
    $region92: #{decoder_forward.1} parent=1 // pred_region
      %583 = dma.done [#allocation16], 64
    $region93: #{decoder_forward.1} parent=1 // pred_fallthru
      _
    // Predicated region
    $region94: #{decoder_forward.1} parent=1 // pred_check
      _
    $region95: #{decoder_forward.1} parent=1 // pred_check_branch
      %585 = sbr.rel (0) target = $region97
    $region96: #{decoder_forward.1} parent=1 // pred_region
      %586 = dma.done [#allocation16], 64
    $region97: #{decoder_forward.1} parent=1 // pred_fallthru
      _
    %587 = vsyncpa [#allocation3], 1
    %588 = vsyncpa [#allocation6], 1
    %589 = vsyncpa [#allocation9], 1
    %590 = vsyncpa [#allocation12], 1
    %591 = vsyncpa [#allocation4], 1
    %592 = vsyncpa [#allocation16], 1

</llo_original>
